<compile_context>
chip_gen: v6e
topology: v6e:2x2x1
jax: 0.10.0
libtpu: 0.0.40
codegen_flags: <defaults>
</compile_context>

<pallas_src>
import math

import jax
import jax.numpy as jnp
from jax.experimental import pallas as pl
from jax.experimental.pallas import tpu as pltpu


def _resblock_kernel_acc(rw_ref, x_mm_ref, x_res_ref, w_ref, b_ref, o_ref,
                         acc_ref):
    """K-tiled path: f32 VMEM accumulator, epilogue on the last K step.

    rw_ref   : SMEM (1,)           -- resweight scalar
    x_mm_ref : VMEM (TB, TK)       -- x slab for the matmul (f32 or bf16)
    x_res_ref: VMEM (TB, TN)       -- x slab for the residual add (f32)
    w_ref    : VMEM (TK, TN)       -- W^T, pre-transposed in the wrapper
    b_ref    : VMEM (1, TN)        -- bias
    o_ref    : VMEM (TB, TN)
    acc_ref  : VMEM (TB, TN) f32 scratch accumulator
    """
    k = pl.program_id(2)
    nk = pl.num_programs(2)

    @pl.when(k == 0)
    def _():
        acc_ref[...] = jnp.zeros_like(acc_ref)

    acc_ref[...] += jnp.dot(x_mm_ref[...], w_ref[...],
                            preferred_element_type=jnp.float32)

    @pl.when(k == nk - 1)
    def _():
        h = jnp.maximum(acc_ref[...] + b_ref[...].astype(jnp.float32), 0.0)
        # Dropout is identity in eval mode.
        o_ref[...] = (x_res_ref[...].astype(jnp.float32)
                      + h * rw_ref[0]).astype(o_ref.dtype)


def _resblock_kernel_fast(rw_ref, x_mm_ref, x_res_ref, w_ref, b_ref, o_ref):
    """Single-K-step path: no scratch accumulator, straight-through epilogue."""
    h = jnp.dot(x_mm_ref[...], w_ref[...], preferred_element_type=jnp.float32)
    h = jnp.maximum(h + b_ref[...].astype(jnp.float32), 0.0)
    o_ref[...] = (x_res_ref[...].astype(jnp.float32)
                  + h * rw_ref[0]).astype(o_ref.dtype)


def _vmem_cap_bytes():
    # Leave headroom below physical VMEM (esp. v7x: 64 MiB per TensorCore).
    try:
        return int(0.75 * pltpu.get_tpu_info().vmem_capacity_bytes)
    except Exception:
        return 48 * 1024 * 1024


def resblock_forward(x, weight, bias, resweight, *,
                     tile_b=512, tile_n=512, tile_k=512, mxu_dtype=None):
    """x: [B, D_in], weight: [D_out, D_in] (PyTorch layout), bias: [D_out]."""
    B, d_in = x.shape
    d_out, d_in_w = weight.shape
    assert d_in_w == d_in
    assert d_in == d_out, "residual add requires input_size == output_size"

    # Clamp requested tiles to the (possibly small) problem dims.
    tile_b = min(tile_b, B)
    tile_n = min(tile_n, d_out)
    tile_k = min(tile_k, d_in)
    # Megacore: keep at least one "parallel" grid axis with extent >= 2 when
    # legal, so v7x's second TensorCore is not idle.
    if B // tile_b == 1 and d_out // tile_n == 1:
        half = tile_b // 2
        if half >= 8 and half % 8 == 0 and B % half == 0:
            tile_b = half
    # TODO(synk): non-divisible shapes (e.g. B=300) would need padding;
    # asserted out for now.
    assert B % tile_b == 0 and d_out % tile_n == 0 and d_in % tile_k == 0, (
        "tile sizes must divide (B, d_out, d_in)")

    # One-time wrapper-side layout / dtype prep (amortized over the call):
    w_t = weight.T                      # [in, out] -> plain trans-free matmul
    x_mm = x
    if mxu_dtype is not None:
        x_mm = x_mm.astype(mxu_dtype)   # streamed MXU operands in bf16
        w_t = w_t.astype(mxu_dtype)
    b2d = bias.reshape(1, d_out)
    rw = jnp.asarray(resweight, jnp.float32).reshape(1)

    nk = d_in // tile_k
    use_acc = nk > 1

    # VMEM budget for the explicit limit (double-buffered streamed arrays).
    mm_isz = jnp.dtype(x_mm.dtype).itemsize
    res_isz = jnp.dtype(x.dtype).itemsize
    b_isz = jnp.dtype(b2d.dtype).itemsize
    out_isz = jnp.dtype(x.dtype).itemsize
    dbl = 2
    budget = dbl * (mm_isz * (tile_b * tile_k + tile_k * tile_n)
                    + res_isz * tile_b * tile_n
                    + b_isz * tile_n
                    + out_isz * tile_b * tile_n)
    if use_acc:
        budget += 4 * tile_b * tile_n
    vmem_limit = int(min(max(2 * budget, 32 * 1024 * 1024), _vmem_cap_bytes()))

    grid = (B // tile_b, d_out // tile_n, nk)

    in_specs = [
        pl.BlockSpec(memory_space=pltpu.MemorySpace.SMEM),           # resweight
        pl.BlockSpec((tile_b, tile_k), lambda i, j, k: (i, k)),      # x (matmul)
        pl.BlockSpec((tile_b, tile_n), lambda i, j, k: (i, j)),      # x (residual)
        pl.BlockSpec((tile_k, tile_n), lambda i, j, k: (k, j)),      # W^T [in, out]
        pl.BlockSpec((1, tile_n),      lambda i, j, k: (0, j)),      # bias
    ]
    out_spec = pl.BlockSpec((tile_b, tile_n), lambda i, j, k: (i, j))

    kernel = _resblock_kernel_acc if use_acc else _resblock_kernel_fast
    scratch = [pltpu.VMEM((tile_b, tile_n), jnp.float32)] if use_acc else []

    return pl.pallas_call(
        kernel,
        out_shape=jax.ShapeDtypeStruct((B, d_out), x.dtype),
        grid_spec=pltpu.PrefetchScalarGridSpec(
            num_scalar_prefetch=0,
            grid=grid,
            in_specs=in_specs,
            out_specs=out_spec,
            scratch_shapes=scratch,
        ),
        compiler_params=pltpu.CompilerParams(
            dimension_semantics=("parallel", "parallel", "arbitrary"),
            vmem_limit_bytes=vmem_limit),
    )(rw, x_mm, x, w_t, b2d)   # <-- 5 arrays, matching the 5 in_specs


if __name__ == "__main__":
    # Small deterministic setup consistent with ResBlock(input_size=D, output_size=D).
    B, D = 32, 256
    key = jax.random.PRNGKey(0)
    kx, kw, kb = jax.random.split(key, 3)

    x = jax.random.normal(kx, (B, D), dtype=jnp.float32)
    bound = 1.0 / math.sqrt(D)
    weight = jax.random.uniform(kw, (D, D), jnp.float32, -bound, bound)  # [out, in]
    bias = jax.random.uniform(kb, (D,), jnp.float32, -bound, bound)
    resweight0 = jnp.float32(0.0)   # nn.Parameter(torch.FloatTensor([0]))

    def ref_fn(x, w, b, rw):
        return x + jnp.maximum(x @ w.T + b, 0.0) * rw   # eval-mode dropout = id

    # 1) Default (large, clamped) tiles -> single-K fast path, f32 operands.
    out = jax.block_until_ready(resblock_forward(x, weight, bias, resweight0))
    assert jnp.allclose(out, ref_fn(x, weight, bias, resweight0),
                        atol=1e-5, rtol=1e-5)

    rw2 = jnp.float32(0.5)
    out2 = jax.block_until_ready(resblock_forward(x, weight, bias, rw2))
    assert jnp.allclose(out2, ref_fn(x, weight, bias, rw2),
                        atol=1e-5, rtol=1e-5)

    # 2) Explicit small tiles -> exercises the K-tiled accumulator path.
    out3 = jax.block_until_ready(
        resblock_forward(x, weight, bias, rw2, tile_b=8, tile_n=128, tile_k=128))
    assert jnp.allclose(out3, ref_fn(x, weight, bias, rw2),
                        atol=1e-5, rtol=1e-5)

    # 3) bf16 MXU operands (cast once in the wrapper; f32 accumulation/epilogue).
    out4 = jax.block_until_ready(
        resblock_forward(x, weight, bias, rw2, mxu_dtype=jnp.bfloat16))
    assert jnp.allclose(out4, ref_fn(x, weight, bias, rw2),
                        atol=2e-2, rtol=2e-2)

    print("KERNEL_OK")
</pallas_src>

<mosaic_0001>
module attributes {stable_mosaic.version = 11 : i64} {
  func.func @_resblock_kernel_fast(%arg0: i32, %arg1: i32, %arg2: i32, %arg3: memref<1xf32, #tpu.memory_space<smem>>, %arg4: memref<16x256xf32, #tpu.memory_space<vmem>>, %arg5: memref<16x256xf32, #tpu.memory_space<vmem>>, %arg6: memref<256x256xf32, #tpu.memory_space<vmem>>, %arg7: memref<1x256xf32, #tpu.memory_space<vmem>>, %arg8: memref<16x256xf32, #tpu.memory_space<vmem>>) attributes {dimension_semantics = [#tpu.dimension_semantics<parallel>, #tpu.dimension_semantics<parallel>, #tpu.dimension_semantics<arbitrary>], iteration_bounds = array<i64: 2, 1, 1>, scalar_prefetch = 0 : i64, scratch_operands = 0 : i64, tpu.core_type = #tpu.core_type<tc>, window_params = [{transform_indices = @transform_0, window_bounds = array<i64: 1>}, {transform_indices = @transform_1, window_bounds = array<i64: 16, 256>}, {transform_indices = @transform_2, window_bounds = array<i64: 16, 256>}, {transform_indices = @transform_3, window_bounds = array<i64: 256, 256>}, {transform_indices = @transform_4, window_bounds = array<i64: 1, 256>}, {transform_indices = @transform_5, window_bounds = array<i64: 16, 256>}]} {
    %c0 = arith.constant 0 : index
    %c0_0 = arith.constant 0 : index
    %0 = vector.load %arg4[%c0, %c0_0] : memref<16x256xf32, #tpu.memory_space<vmem>>, vector<16x256xf32>
    %c0_1 = arith.constant 0 : index
    %c0_2 = arith.constant 0 : index
    %1 = vector.load %arg6[%c0_1, %c0_2] : memref<256x256xf32, #tpu.memory_space<vmem>>, vector<256x256xf32>
    %cst = arith.constant dense<0.000000e+00> : vector<16x256xf32>
    %2 = tpu.matmul %0, %1, %cst {dimension_numbers = #tpu.dot_dimension_numbers<[1], [0], [0], [1], [0, 0, 1, 1], [], []>} : vector<16x256xf32>, vector<256x256xf32>, vector<16x256xf32> -> vector<16x256xf32>
    %c0_3 = arith.constant 0 : index
    %c0_4 = arith.constant 0 : index
    %3 = vector.load %arg7[%c0_3, %c0_4] : memref<1x256xf32, #tpu.memory_space<vmem>>, vector<1x256xf32>
    %4 = vector.broadcast %3 : vector<1x256xf32> to vector<16x256xf32>
    %5 = arith.addf %2, %4 : vector<16x256xf32>
    %cst_5 = arith.constant 0.000000e+00 : f32
    %6 = vector.broadcast %cst_5 : f32 to vector<16x256xf32>
    %7 = arith.maximumf %5, %6 : vector<16x256xf32>
    %c0_6 = arith.constant 0 : index
    %c0_7 = arith.constant 0 : index
    %8 = vector.load %arg5[%c0_6, %c0_7] : memref<16x256xf32, #tpu.memory_space<vmem>>, vector<16x256xf32>
    %c0_8 = arith.constant 0 : index
    %9 = memref.load %arg3[%c0_8] : memref<1xf32, #tpu.memory_space<smem>>
    %10 = vector.broadcast %9 : f32 to vector<16x256xf32>
    %11 = arith.mulf %7, %10 : vector<16x256xf32>
    %12 = arith.addf %8, %11 : vector<16x256xf32>
    %c0_9 = arith.constant 0 : index
    %c0_10 = arith.constant 0 : index
    %13 = vector.load %arg8[%c0_9, %c0_10] : memref<16x256xf32, #tpu.memory_space<vmem>>, vector<16x256xf32>
    tpu.vector_store %arg8[%c0_9, %c0_10], %12 {strides = array<i32>} : memref<16x256xf32, #tpu.memory_space<vmem>>, vector<16x256xf32>,
    return
  }
  func.func @transform_0(%arg0: i32, %arg1: i32, %arg2: i32) -> i32 {
    %c0_i32 = arith.constant 0 : i32
    %c0_i32_0 = arith.constant 0 : i32
    return %c0_i32 : i32
  }
  func.func @transform_1(%arg0: i32, %arg1: i32, %arg2: i32) -> (i32, i32) {
    %c0_i32 = arith.constant 0 : i32
    return %arg0, %arg2 : i32, i32
  }
  func.func @transform_2(%arg0: i32, %arg1: i32, %arg2: i32) -> (i32, i32) {
    %c0_i32 = arith.constant 0 : i32
    return %arg0, %arg1 : i32, i32
  }
  func.func @transform_3(%arg0: i32, %arg1: i32, %arg2: i32) -> (i32, i32) {
    %c0_i32 = arith.constant 0 : i32
    return %arg2, %arg1 : i32, i32
  }
  func.func @transform_4(%arg0: i32, %arg1: i32, %arg2: i32) -> (i32, i32) {
    %c0_i32 = arith.constant 0 : i32
    %c0_i32_0 = arith.constant 0 : i32
    return %c0_i32, %arg1 : i32, i32
  }
  func.func @transform_5(%arg0: i32, %arg1: i32, %arg2: i32) -> (i32, i32) {
    %c0_i32 = arith.constant 0 : i32
    return %arg0, %arg1 : i32, i32
  }
}

</mosaic_0001>

<llo_original>
// kernel: tpu_custom_call.1
$region0: #{tpu_custom_call.1}
  #allocation0 [shape = 'u32[]', space=smem, size = 0x4, offset = 0x4, fixed_abs, tag = 'smem constant byte address 0x4 - core index']
  #allocation1 [shape = 'u32[144,128]{1,0:T(1,128)}', space=vmem, size = 0x12000, scoped, tag = 'internal scratch']
  #allocation2 [shape = 'f32[1]{0:T(128)S(6)}', space=smem, size = 0x200, scoped, tag = 'scoped memory for tpu_custom_call.1']
  %s0 = inlined_call_operand.<no memory space> [shape: f32[1], index: 0, kind: input, shape index: {}]
  %s1 = inlined_call_operand.hbm [shape: f32[32,256], index: 1, kind: input, shape index: {}]
  %s2 = inlined_call_operand.hbm [shape: f32[32,256], index: 2, kind: input, shape index: {}]
  %s3 = inlined_call_operand.hbm [shape: f32[256,256], index: 3, kind: input, shape index: {}]
  %s4 = inlined_call_operand.vmem [shape: f32[1,256], index: 4, kind: input, shape index: {}]
  %s5 = inlined_call_operand.hbm [shape: f32[32,256], index: 5, kind: output, shape index: {}]
  %s6 = sld [smem:[#allocation0]]
  $region65: #{tpu_custom_call.1} parent=0
    _
  %s8 = ssub.s32 1, %s6
  %s9 = scalar_select 0, %s8, %s6
  %10 = sst [smem:[#allocation2]] %s0
  $region1: #{tpu_custom_call.1} parent=0
    #allocation3 [shape = 'u8[32768]{0}', space=vmem, size = 0x8000, scoped, tag = 'input window, operand 1']
    #allocation4 [shape = 's32[2]{0}', space=sflag, size = 0x8, scoped, tag = 'scoped memory for tpu_custom_call.1']
    #allocation5 [shape = 's32[2]{0}', space=sflag, size = 0x8, scoped, tag = 'scoped memory for tpu_custom_call.1']
    #allocation6 [shape = 'u8[32768]{0}', space=vmem, size = 0x8000, scoped, tag = 'input window, operand 2']
    #allocation7 [shape = 's32[2]{0}', space=sflag, size = 0x8, scoped, tag = 'scoped memory for tpu_custom_call.1']
    #allocation8 [shape = 'u8[262144]{0}', space=vmem, size = 0x40000, scoped, tag = 'input window, operand 3, single buffered']
    #allocation9 [shape = 'u8[32768]{0}', space=vmem, size = 0x8000, scoped, tag = 'output window, operand 0']
    %11 = vsyncpa [#allocation4], 0
    %s12 = scalar_lea.sflag [#allocation4], 1
    %13 = vsyncpa %s12, 0
    %14 = vsyncpa [#allocation7], 0
    %s15 = scalar_lea.sflag [#allocation7], 1
    %16 = vsyncpa %s15, 0
    %17 = vsyncpa [#allocation5], 0
    %s18 = scalar_lea.sflag [#allocation5], 1
    %19 = vsyncpa %s18, 0
    loop: start=0, step=1, limit=4
    $region2: #{tpu_custom_call.1} parent=1 // loop_pre_header
      _
    $region3: #{tpu_custom_call.1} parent=1 // loop_header
      %s21 = sphi 0, %s25
      %p22 = scmp.ge.s32.totalorder %s21, 4
      %s28 = sphi 0, %s47
      %s29 = sphi 0, %s43
      %s30 = sphi 0, %s39
      %s31 = sphi 0, %s28
      %s32 = sphi 0, %s29
      %s33 = sphi 0, %s30
      %s34 = sphi 0, %s31
      %s35 = sphi 0, %s32
      %s36 = sphi 0, %s33
      %s48 = sphi 0, %s48
      %s50 = sphi 0, %s48
      %s51 = sphi 0, %s50
      %s65 = sphi 0, %s51
      %s73 = sphi 0, %s75
      %s76 = sphi 0, %s73
      %s77 = sphi 0, %s76
      %s93 = sphi 0, %s77
      %s101 = sphi 0, %s103
      %s104 = sphi 0, %s101
      %s105 = sphi 0, %s104
      %s121 = sphi 0, %s105
      %s129 = sphi 0, %s131
      %s132 = sphi 0, %s129
      %s133 = sphi 0, %s132
      %s149 = sphi 0, %s133
      %s155 = sphi 0, %s157
      %s158 = sphi 0, %s155
      %s159 = sphi 0, %s158
      %s175 = sphi 0, %s159
      %s183 = sphi 0, %s185
      %s186 = sphi 0, %s183
      %s187 = sphi 0, %s186
      %s203 = sphi 0, %s187
    $region4: #{tpu_custom_call.1} parent=1 // loop_header_branch
      %24 = sbr.rel (%p22) target = $region8
    $region5: #{tpu_custom_call.1} parent=1 // loop_body
      %s26 = ssub.s32 %s21, 1
      %s27 = ssub.s32 %s21, 2
      %s37 = sadd.s32 1, %s30
      %p38 = scmp.ge.s32.totalorder %s37, 1
      %s39 = scalar_select %p38, 0, %s37
      %s40 = sadd.s32 1, %s29
      %s41 = scalar_select %p38, %s40, %s29
      %p42 = scmp.ge.s32.totalorder %s41, 1
      %s43 = scalar_select %p42, 0, %s41
      %s44 = sadd.s32 1, %s28
      %s45 = scalar_select %p42, %s44, %s28
      %p46 = scmp.ge.s32.totalorder %s45, 2
      %s47 = scalar_select %p46, 0, %s45
      %s49 = sadd.s32 %s48, 1
      %p52 = scmp.eq.s32.totalorder %s21, 1
      %p53 = scmp.ne.s32.totalorder %s48, %s50
      %p54 = scmp.eq.s32.totalorder %s21, 0
      %p55 = por %p53, %p54
      %p56 = scmp.ne.s32.totalorder %s48, %s50
      %p57 = scmp.eq.s32.totalorder %s26, 1
      %p58 = por %p56, %p57
      %p59 = scmp.ne.s32.totalorder %s50, %s51
      %p60 = scmp.eq.s32.totalorder %s26, 0
      %p61 = por %p59, %p60
      %p62 = scmp.ne.s32.totalorder %s50, %s51
      %p63 = scmp.eq.s32.totalorder %s27, 1
      %p64 = por %p62, %p63
      %p66 = scmp.ne.s32.totalorder %s51, %s65
      %p67 = scmp.eq.s32.totalorder %s27, 0
      %p68 = por %p66, %p67
      %s69 = ssub.s32 %s28, %s47
      %s70 = ssub.s32 %s30, %s39
      %s71 = sor.u32 %s69, %s70
      %p72 = scmp.eq.s32.totalorder %s71, 0
      %s74 = sadd.s32 %s73, 1
      %s75 = scalar_select %p72, %s73, %s74
      %p78 = pneg %p72
      %p79 = scmp.eq.s32.totalorder %s21, 1
      %p80 = por %p78, %p79
      %p81 = scmp.ne.s32.totalorder %s73, %s76
      %p82 = scmp.eq.s32.totalorder %s21, 0
      %p83 = por %p81, %p82
      %p84 = scmp.ne.s32.totalorder %s73, %s76
      %p85 = scmp.eq.s32.totalorder %s26, 1
      %p86 = por %p84, %p85
      %p87 = scmp.ne.s32.totalorder %s76, %s77
      %p88 = scmp.eq.s32.totalorder %s26, 0
      %p89 = por %p87, %p88
      %p90 = scmp.ne.s32.totalorder %s76, %s77
      %p91 = scmp.eq.s32.totalorder %s27, 1
      %p92 = por %p90, %p91
      %p94 = scmp.ne.s32.totalorder %s77, %s93
      %p95 = scmp.eq.s32.totalorder %s27, 0
      %p96 = por %p94, %p95
      %s97 = ssub.s32 %s28, %s47
      %s98 = ssub.s32 %s29, %s43
      %s99 = sor.u32 %s97, %s98
      %p100 = scmp.eq.s32.totalorder %s99, 0
      %s102 = sadd.s32 %s101, 1
      %s103 = scalar_select %p100, %s101, %s102
      %p106 = pneg %p100
      %p107 = scmp.eq.s32.totalorder %s21, 1
      %p108 = por %p106, %p107
      %p109 = scmp.ne.s32.totalorder %s101, %s104
      %p110 = scmp.eq.s32.totalorder %s21, 0
      %p111 = por %p109, %p110
      %p112 = scmp.ne.s32.totalorder %s101, %s104
      %p113 = scmp.eq.s32.totalorder %s26, 1
      %p114 = por %p112, %p113
      %p115 = scmp.ne.s32.totalorder %s104, %s105
      %p116 = scmp.eq.s32.totalorder %s26, 0
      %p117 = por %p115, %p116
      %p118 = scmp.ne.s32.totalorder %s104, %s105
      %p119 = scmp.eq.s32.totalorder %s27, 1
      %p120 = por %p118, %p119
      %p122 = scmp.ne.s32.totalorder %s105, %s121
      %p123 = scmp.eq.s32.totalorder %s27, 0
      %p124 = por %p122, %p123
      %s125 = ssub.s32 %s30, %s39
      %s126 = ssub.s32 %s29, %s43
      %s127 = sor.u32 %s125, %s126
      %p128 = scmp.eq.s32.totalorder %s127, 0
      %s130 = sadd.s32 %s129, 1
      %s131 = scalar_select %p128, %s129, %s130
      %p134 = pneg %p128
      %p135 = scmp.eq.s32.totalorder %s21, 1
      %p136 = por %p134, %p135
      %p137 = scmp.ne.s32.totalorder %s129, %s132
      %p138 = scmp.eq.s32.totalorder %s21, 0
      %p139 = por %p137, %p138
      %p140 = scmp.ne.s32.totalorder %s129, %s132
      %p141 = scmp.eq.s32.totalorder %s26, 1
      %p142 = por %p140, %p141
      %p143 = scmp.ne.s32.totalorder %s132, %s133
      %p144 = scmp.eq.s32.totalorder %s26, 0
      %p145 = por %p143, %p144
      %p146 = scmp.ne.s32.totalorder %s132, %s133
      %p147 = scmp.eq.s32.totalorder %s27, 1
      %p148 = por %p146, %p147
      %p150 = scmp.ne.s32.totalorder %s133, %s149
      %p151 = scmp.eq.s32.totalorder %s27, 0
      %p152 = por %p150, %p151
      %s153 = ssub.s32 %s29, %s43
      %p154 = scmp.eq.s32.totalorder %s153, 0
      %s156 = sadd.s32 %s155, 1
      %s157 = scalar_select %p154, %s155, %s156
      %p160 = pneg %p154
      %p161 = scmp.eq.s32.totalorder %s21, 1
      %p162 = por %p160, %p161
      %p163 = scmp.ne.s32.totalorder %s155, %s158
      %p164 = scmp.eq.s32.totalorder %s21, 0
      %p165 = por %p163, %p164
      %p166 = scmp.ne.s32.totalorder %s155, %s158
      %p167 = scmp.eq.s32.totalorder %s26, 1
      %p168 = por %p166, %p167
      %p169 = scmp.ne.s32.totalorder %s158, %s159
      %p170 = scmp.eq.s32.totalorder %s26, 0
      %p171 = por %p169, %p170
      %p172 = scmp.ne.s32.totalorder %s158, %s159
      %p173 = scmp.eq.s32.totalorder %s27, 1
      %p174 = por %p172, %p173
      %p176 = scmp.ne.s32.totalorder %s159, %s175
      %p177 = scmp.eq.s32.totalorder %s27, 0
      %p178 = por %p176, %p177
      %s179 = ssub.s32 %s28, %s47
      %s180 = ssub.s32 %s29, %s43
      %s181 = sor.u32 %s179, %s180
      %p182 = scmp.eq.s32.totalorder %s181, 0
      %s184 = sadd.s32 %s183, 1
      %s185 = scalar_select %p182, %s183, %s184
      %p188 = pneg %p182
      %p189 = scmp.eq.s32.totalorder %s21, 1
      %p190 = por %p188, %p189
      %p191 = scmp.ne.s32.totalorder %s183, %s186
      %p192 = scmp.eq.s32.totalorder %s21, 0
      %p193 = por %p191, %p192
      %p194 = scmp.ne.s32.totalorder %s183, %s186
      %p195 = scmp.eq.s32.totalorder %s26, 1
      %p196 = por %p194, %p195
      %p197 = scmp.ne.s32.totalorder %s186, %s187
      %p198 = scmp.eq.s32.totalorder %s26, 0
      %p199 = por %p197, %p198
      %p200 = scmp.ne.s32.totalorder %s186, %s187
      %p201 = scmp.eq.s32.totalorder %s27, 1
      %p202 = por %p200, %p201
      %p204 = scmp.ne.s32.totalorder %s187, %s203
      %p205 = scmp.eq.s32.totalorder %s27, 0
      %p206 = por %p204, %p205
      %p207 = scmp.le.s32.totalorder 1, %s21
      %p208 = scmp.lt.s32.totalorder %s21, 3
      %p209 = pnand %p207, %p208
      %p210 = pneg %p209
      // Predicated region
      $region9: #{tpu_custom_call.1} parent=5 // pred_check
        _
      $region10: #{tpu_custom_call.1} parent=5 // pred_check_branch
        %212 = sbr.rel (%p209) target = $region12
      $region11: #{tpu_custom_call.1} parent=5 // pred_region
        %s213 = ssub.s32 %s21, 1
        // Predicated region
        $region13: #{tpu_custom_call.1} parent=11 // pred_check
          %p214 = pneg %p61
        $region14: #{tpu_custom_call.1} parent=11 // pred_check_branch
          %216 = sbr.rel (%p214) target = $region16
        $region15: #{tpu_custom_call.1} parent=11 // pred_region
          _
        $region16: #{tpu_custom_call.1} parent=11 // pred_fallthru
          _
        // Predicated region
        $region17: #{tpu_custom_call.1} parent=11 // pred_check
          %p217 = pneg %p145
        $region18: #{tpu_custom_call.1} parent=11 // pred_check_branch
          %219 = sbr.rel (%p217) target = $region20
        $region19: #{tpu_custom_call.1} parent=11 // pred_region
          %s220 = smul.u32 32, %s33
          %s221 = smul.u32 2, %s32
          %s223 = ssub.s32 8192, 8192
          %224 = vsyncadd [#allocation7], %s223
          %s225 = smul.addr %s220, 2
          %s226 = sadd.s32 %s221, %s225
          %s227 = smul.addr %s226, 128
          %s228 = scalar_lea.hbm %s3, %s227
          %s229 = sshll.u32 [#allocation8], 4
          %s230 = int_to_ptr.vmem [resolvable:$true] %s229
          %235 = dma.hbm_to_vmem [thread:$0]  %s228, 8192, %s230, [#allocation7], 256, 256, 16
        $region20: #{tpu_custom_call.1} parent=11 // pred_fallthru
          _
        // Predicated region
        $region21: #{tpu_custom_call.1} parent=11 // pred_check
          %p236 = pneg %p171
        $region22: #{tpu_custom_call.1} parent=11 // pred_check_branch
          %238 = sbr.rel (%p236) target = $region24
        $region23: #{tpu_custom_call.1} parent=11 // pred_region
          %s239 = smul.u32 2, %s32
          %p240 = scmp.lt.s32.totalorder %s239, 1
          %s241 = scalar_select %p240, %s239, 1
          %s242 = scalar_lea.vmem %s4, %s241
          %s243 = smul.u32 2, %s32
        $region24: #{tpu_custom_call.1} parent=11 // pred_fallthru
          _
      $region12: #{tpu_custom_call.1} parent=5 // pred_fallthru
        _
      %p244 = scmp.lt.s32.totalorder %s21, 2
      // Predicated region
      $region25: #{tpu_custom_call.1} parent=5 // pred_check
        %p245 = pneg %p244
      $region26: #{tpu_custom_call.1} parent=5 // pred_check_branch
        %247 = sbr.rel (%p245) target = $region28
      $region27: #{tpu_custom_call.1} parent=5 // pred_region
        // Predicated region
        $region29: #{tpu_custom_call.1} parent=27 // pred_check
          %p248 = pneg %p83
        $region30: #{tpu_custom_call.1} parent=27 // pred_check_branch
          %250 = sbr.rel (%p248) target = $region32
        $region31: #{tpu_custom_call.1} parent=27 // pred_region
          %s251 = sand.u32 %s73, 1
          %s252 = scalar_lea.sflag [#allocation4], %s251
          %s253 = sand.u32 %s73, 1
          %s254 = smul.addr %s253, 32
          %s255 = scalar_lea.vmem [#allocation3], %s254
          %s256 = smul.u32 2, %s28
          %s257 = smul.u32 2, %s30
          %s259 = ssub.s32 512, 512
          %260 = vsyncadd %s252, %s259
          %s261 = smul.addr %s256, 2
          %s262 = sadd.s32 %s257, %s261
          %s263 = smul.addr %s262, 128
          %s264 = scalar_lea.hbm %s1, %s263
          %s265 = sshll.u32 %s255, 4
          %s266 = int_to_ptr.vmem [resolvable:$true] %s265
          %271 = dma.hbm_to_vmem [thread:$0]  %s264, 512, %s266, %s252, 256, 256, 16
        $region32: #{tpu_custom_call.1} parent=27 // pred_fallthru
          _
        // Predicated region
        $region33: #{tpu_custom_call.1} parent=27 // pred_check
          %p272 = pneg %p111
        $region34: #{tpu_custom_call.1} parent=27 // pred_check_branch
          %274 = sbr.rel (%p272) target = $region36
        $region35: #{tpu_custom_call.1} parent=27 // pred_region
          %s275 = sand.u32 %s21, 1
          %s276 = scalar_lea.sflag [#allocation7], %s275
          %s277 = sand.u32 %s101, 1
          %s278 = smul.addr %s277, 32
          %s279 = scalar_lea.vmem [#allocation6], %s278
          %s280 = smul.u32 2, %s28
          %s281 = smul.u32 2, %s29
          %s283 = ssub.s32 512, 512
          %284 = vsyncadd %s276, %s283
          %s285 = smul.addr %s280, 2
          %s286 = sadd.s32 %s281, %s285
          %s287 = smul.addr %s286, 128
          %s288 = scalar_lea.hbm %s2, %s287
          %s289 = sshll.u32 %s279, 4
          %s290 = int_to_ptr.vmem [resolvable:$true] %s289
          %295 = dma.hbm_to_vmem [thread:$0]  %s288, 512, %s290, %s276, 256, 256, 16
        $region36: #{tpu_custom_call.1} parent=27 // pred_fallthru
          _
      $region28: #{tpu_custom_call.1} parent=5 // pred_fallthru
        _
      %p296 = scmp.le.s32.totalorder 1, %s21
      %p297 = scmp.lt.s32.totalorder %s21, 3
      %p298 = pnand %p296, %p297
      %p299 = pneg %p298
      // Predicated region
      $region37: #{tpu_custom_call.1} parent=5 // pred_check
        _
      $region38: #{tpu_custom_call.1} parent=5 // pred_check_branch
        %301 = sbr.rel (%p298) target = $region40
      $region39: #{tpu_custom_call.1} parent=5 // pred_region
        %s302 = ssub.s32 %s21, 1
        %s303 = sand.u32 %s76, 1
        %s304 = scalar_lea.sflag [#allocation4], %s303
        %s305 = sand.u32 %s76, 1
        %s306 = smul.addr %s305, 32
        %s307 = scalar_lea.vmem [#allocation3], %s306
        // Predicated region
        $region41: #{tpu_custom_call.1} parent=39 // pred_check
          %p308 = pneg %p89
        $region42: #{tpu_custom_call.1} parent=39 // pred_check_branch
          %310 = sbr.rel (%p308) target = $region44
        $region43: #{tpu_custom_call.1} parent=39 // pred_region
          %311 = dma.done %s304, 512
        $region44: #{tpu_custom_call.1} parent=39 // pred_fallthru
          _
        %s312 = sand.u32 %s26, 1
        %s313 = scalar_lea.sflag [#allocation7], %s312
        %s314 = sand.u32 %s104, 1
        %s315 = smul.addr %s314, 32
        %s316 = scalar_lea.vmem [#allocation6], %s315
        // Predicated region
        $region45: #{tpu_custom_call.1} parent=39 // pred_check
          %p317 = pneg %p117
        $region46: #{tpu_custom_call.1} parent=39 // pred_check_branch
          %319 = sbr.rel (%p317) target = $region48
        $region47: #{tpu_custom_call.1} parent=39 // pred_region
          %320 = dma.done %s313, 512
        $region48: #{tpu_custom_call.1} parent=39 // pred_fallthru
          _
        // Predicated region
        $region49: #{tpu_custom_call.1} parent=39 // pred_check
          %p321 = pneg %p145
        $region50: #{tpu_custom_call.1} parent=39 // pred_check_branch
          %323 = sbr.rel (%p321) target = $region52
        $region51: #{tpu_custom_call.1} parent=39 // pred_region
          %324 = dma.done [#allocation7], 8192
        $region52: #{tpu_custom_call.1} parent=39 // pred_fallthru
          _
        %p325 = pneg %p61
        %p326 = pneg %p58
        %s327 = sand.u32 %s76, 1
        %s328 = scalar_lea.sflag [#allocation4], %s327
        %s329 = sand.u32 %s76, 1
        %s330 = smul.addr %s329, 32
        %s331 = scalar_lea.vmem [#allocation3], %s330
        %p332 = pneg %p89
        %p333 = pneg %p86
        %s334 = sand.u32 %s26, 1
        %s335 = scalar_lea.sflag [#allocation7], %s334
        %s336 = sand.u32 %s104, 1
        %s337 = smul.addr %s336, 32
        %s338 = scalar_lea.vmem [#allocation6], %s337
        %p339 = pneg %p117
        %p340 = pneg %p114
        %p341 = pneg %p145
        %p342 = pneg %p142
        %s343 = smul.u32 2, %s32
        %p344 = scmp.lt.s32.totalorder %s343, 1
        %s345 = scalar_select %p344, %s343, 1
        %s346 = scalar_lea.vmem %s4, %s345
        %p347 = pneg %p171
        %p348 = pneg %p168
        %p349 = pneg %p199
        %p350 = pneg %p196
        %s351 = sand.u32 %s186, 1
        %s352 = scalar_lea.sflag [#allocation5], %s351
        %s353 = sand.u32 %s186, 1
        %s354 = smul.addr %s353, 32
        %s355 = scalar_lea.vmem [#allocation9], %s354
        %s356 = smul.u32 2, %s31
        %s357 = smul.u32 2, %s33
        %s358 = smul.u32 2, %s31
        %s359 = smul.u32 2, %s32
        %s360 = smul.u32 32, %s33
        %s361 = smul.u32 2, %s32
        %s362 = smul.u32 2, %s32
        %p363 = scmp.lt.s32.totalorder %s362, 1
        %s364 = scalar_select %p363, %s362, 1
        %s365 = scalar_lea.vmem %s4, %s364
        %s366 = smul.u32 2, %s32
        %s367 = smul.u32 2, %s31
        %s368 = smul.u32 2, %s32
        %v369 = vld [vmem:[%s307] sm:$0xff]
        %v370 = vld [vmem:[%s307 + $0x8] sm:$0xff]
        %v371 = vld [vmem:[%s307 + $0x10] sm:$0xff]
        %v372 = vld [vmem:[%s307 + $0x18] sm:$0xff]
        %v373 = vld [vmem:[#allocation8] sm:$0xff]
        %v374 = vld [vmem:[#allocation8 + $0x8] sm:$0xff]
        %v375 = vld [vmem:[#allocation8 + $0x10] sm:$0xff]
        %v376 = vld [vmem:[#allocation8 + $0x18] sm:$0xff]
        %v377 = vld [vmem:[#allocation8 + $0x20] sm:$0xff]
        %v378 = vld [vmem:[#allocation8 + $0x28] sm:$0xff]
        %v379 = vld [vmem:[#allocation8 + $0x30] sm:$0xff]
        %v380 = vld [vmem:[#allocation8 + $0x38] sm:$0xff]
        %v381 = vld [vmem:[#allocation8 + $0x40] sm:$0xff]
        %v382 = vld [vmem:[#allocation8 + $0x48] sm:$0xff]
        %v383 = vld [vmem:[#allocation8 + $0x50] sm:$0xff]
        %v384 = vld [vmem:[#allocation8 + $0x58] sm:$0xff]
        %v385 = vld [vmem:[#allocation8 + $0x60] sm:$0xff]
        %v386 = vld [vmem:[#allocation8 + $0x68] sm:$0xff]
        %v387 = vld [vmem:[#allocation8 + $0x70] sm:$0xff]
        %v388 = vld [vmem:[#allocation8 + $0x78] sm:$0xff]
        %v389 = vld [vmem:[#allocation8 + $0x80] sm:$0xff]
        %v390 = vld [vmem:[#allocation8 + $0x88] sm:$0xff]
        %v391 = vld [vmem:[#allocation8 + $0x90] sm:$0xff]
        %v392 = vld [vmem:[#allocation8 + $0x98] sm:$0xff]
        %v393 = vld [vmem:[#allocation8 + $0xa0] sm:$0xff]
        %v394 = vld [vmem:[#allocation8 + $0xa8] sm:$0xff]
        %v395 = vld [vmem:[#allocation8 + $0xb0] sm:$0xff]
        %v396 = vld [vmem:[#allocation8 + $0xb8] sm:$0xff]
        %v397 = vld [vmem:[#allocation8 + $0xc0] sm:$0xff]
        %v398 = vld [vmem:[#allocation8 + $0xc8] sm:$0xff]
        %v399 = vld [vmem:[#allocation8 + $0xd0] sm:$0xff]
        %v400 = vld [vmem:[#allocation8 + $0xd8] sm:$0xff]
        %v401 = vld [vmem:[#allocation8 + $0xe0] sm:$0xff]
        %v402 = vld [vmem:[#allocation8 + $0xe8] sm:$0xff]
        %v403 = vld [vmem:[#allocation8 + $0xf0] sm:$0xff]
        %v404 = vld [vmem:[#allocation8 + $0xf8] sm:$0xff]
        %v405 = vld [vmem:[#allocation8 + $0x100] sm:$0xff]
        %v406 = vld [vmem:[#allocation8 + $0x108] sm:$0xff]
        %v407 = vld [vmem:[#allocation8 + $0x110] sm:$0xff]
        %v408 = vld [vmem:[#allocation8 + $0x118] sm:$0xff]
        %v409 = vld [vmem:[#allocation8 + $0x120] sm:$0xff]
        %v410 = vld [vmem:[#allocation8 + $0x128] sm:$0xff]
        %v411 = vld [vmem:[#allocation8 + $0x130] sm:$0xff]
        %v412 = vld [vmem:[#allocation8 + $0x138] sm:$0xff]
        %v413 = vld [vmem:[#allocation8 + $0x140] sm:$0xff]
        %v414 = vld [vmem:[#allocation8 + $0x148] sm:$0xff]
        %v415 = vld [vmem:[#allocation8 + $0x150] sm:$0xff]
        %v416 = vld [vmem:[#allocation8 + $0x158] sm:$0xff]
        %v417 = vld [vmem:[#allocation8 + $0x160] sm:$0xff]
        %v418 = vld [vmem:[#allocation8 + $0x168] sm:$0xff]
        %v419 = vld [vmem:[#allocation8 + $0x170] sm:$0xff]
        %v420 = vld [vmem:[#allocation8 + $0x178] sm:$0xff]
        %v421 = vld [vmem:[#allocation8 + $0x180] sm:$0xff]
        %v422 = vld [vmem:[#allocation8 + $0x188] sm:$0xff]
        %v423 = vld [vmem:[#allocation8 + $0x190] sm:$0xff]
        %v424 = vld [vmem:[#allocation8 + $0x198] sm:$0xff]
        %v425 = vld [vmem:[#allocation8 + $0x1a0] sm:$0xff]
        %v426 = vld [vmem:[#allocation8 + $0x1a8] sm:$0xff]
        %v427 = vld [vmem:[#allocation8 + $0x1b0] sm:$0xff]
        %v428 = vld [vmem:[#allocation8 + $0x1b8] sm:$0xff]
        %v429 = vld [vmem:[#allocation8 + $0x1c0] sm:$0xff]
        %v430 = vld [vmem:[#allocation8 + $0x1c8] sm:$0xff]
        %v431 = vld [vmem:[#allocation8 + $0x1d0] sm:$0xff]
        %v432 = vld [vmem:[#allocation8 + $0x1d8] sm:$0xff]
        %v433 = vld [vmem:[#allocation8 + $0x1e0] sm:$0xff]
        %v434 = vld [vmem:[#allocation8 + $0x1e8] sm:$0xff]
        %v435 = vld [vmem:[#allocation8 + $0x1f0] sm:$0xff]
        %v436 = vld [vmem:[#allocation8 + $0x1f8] sm:$0xff]
        %v437 = vld [vmem:[%s365] sm:$0x3]
        %v439 = vlaneseq
        %v440 = vshrl.u32 %v439, 7
        %v441 = vsub.s32 0, %v440
        %v442 = vrot.slane %v437, %v441
        %v443 = vlaneseq
        %v444 = vshrl.u32 %v443, 7
        %v445 = vsub.s32 1, %v444
        %v446 = vrot.slane %v437, %v445
        %449 = vmatprep.subr.mxu0 %v404
        %450 = vmatpush1.msra.mxu0 %v403
        %451 = vmatprep.subr.mxu0 %v402
        %452 = vmatpush1.msra.mxu0 %v401
        %453 = vmatprep.subr.mxu0 %v400
        %454 = vmatpush1.msra.mxu0 %v399
        %455 = vmatprep.subr.mxu0 %v398
        %456 = vmatpush1.msra.mxu0 %v397
        %457 = vmatprep.subr.mxu0 %v396
        %458 = vmatpush1.msra.mxu0 %v395
        %459 = vmatprep.subr.mxu0 %v394
        %460 = vmatpush1.msra.mxu0 %v393
        %461 = vmatprep.subr.mxu0 %v392
        %462 = vmatpush1.msra.mxu0 %v391
        %463 = vmatprep.subr.mxu0 %v390
        %464 = vmatpush1.msra.mxu0 %v389
        %465 = vmatprep.subr.mxu0 %v388
        %466 = vmatpush1.msra.mxu0 %v387
        %467 = vmatprep.subr.mxu0 %v386
        %468 = vmatpush1.msra.mxu0 %v385
        %469 = vmatprep.subr.mxu0 %v384
        %470 = vmatpush1.msra.mxu0 %v383
        %471 = vmatprep.subr.mxu0 %v382
        %472 = vmatpush1.msra.mxu0 %v381
        %473 = vmatprep.subr.mxu0 %v380
        %474 = vmatpush1.msra.mxu0 %v379
        %475 = vmatprep.subr.mxu0 %v378
        %476 = vmatpush1.msra.mxu0 %v377
        %477 = vmatprep.subr.mxu0 %v376
        %478 = vmatpush1.msra.mxu0 %v375
        %479 = vmatprep.subr.mxu0 %v374
        %480 = vmatpush1.msra.mxu0 %v373
        %481 = vmatprep.subr.mxu0 %v436
        %482 = vmatpush2.msra.mxu0 %v435
        %483 = vmatprep.subr.mxu0 %v434
        %484 = vmatpush2.msra.mxu0 %v433
        %485 = vmatprep.subr.mxu0 %v432
        %486 = vmatpush2.msra.mxu0 %v431
        %487 = vmatprep.subr.mxu0 %v430
        %488 = vmatpush2.msra.mxu0 %v429
        %489 = vmatprep.subr.mxu0 %v428
        %490 = vmatpush2.msra.mxu0 %v427
        %491 = vmatprep.subr.mxu0 %v426
        %492 = vmatpush2.msra.mxu0 %v425
        %493 = vmatprep.subr.mxu0 %v424
        %494 = vmatpush2.msra.mxu0 %v423
        %495 = vmatprep.subr.mxu0 %v422
        %496 = vmatpush2.msra.mxu0 %v421
        %497 = vmatprep.subr.mxu0 %v420
        %498 = vmatpush2.msra.mxu0 %v419
        %499 = vmatprep.subr.mxu0 %v418
        %500 = vmatpush2.msra.mxu0 %v417
        %501 = vmatprep.subr.mxu0 %v416
        %502 = vmatpush2.msra.mxu0 %v415
        %503 = vmatprep.subr.mxu0 %v414
        %504 = vmatpush2.msra.mxu0 %v413
        %505 = vmatprep.subr.mxu0 %v412
        %506 = vmatpush2.msra.mxu0 %v411
        %507 = vmatprep.subr.mxu0 %v410
        %508 = vmatpush2.msra.mxu0 %v409
        %509 = vmatprep.subr.mxu0 %v408
        %510 = vmatpush2.msra.mxu0 %v407
        %511 = vmatprep.subr.mxu0 %v406
        %512 = vmatpush2.msra.mxu0 %v405
        %513 = vmatprep.mubr.f32.mxu0 %v370
        %514 = vmatmul.mubr.f32.gmra.mxu0 %v369
        %v515 = vpop.f32.mrf.mxu0
        %v516 = vadd.f32 %v442, %v515
        %v517 = vpop.f32.mrf.mxu0
        %v518 = vadd.f32 %v446, %v517
        %519 = vmatprep.mubr.f32.mxu0 %v372
        %520 = vmatmul.mubr.f32.gmra.mxu0 %v371
        %v521 = vpop.f32.mrf.mxu0
        %v522 = vadd.f32 %v442, %v521
        %v523 = vpop.f32.mrf.mxu0
        %v524 = vadd.f32 %v446, %v523
        %525 = vdwg.mxu0
        %v526 = vmax.f32 %v516, 0.0
        %v527 = vmax.f32 %v518, 0.0
        %v528 = vmax.f32 %v522, 0.0
        %v529 = vmax.f32 %v524, 0.0
        %v530 = vld [vmem:[%s316] sm:$0xff]
        %v531 = vld [vmem:[%s316 + $0x8] sm:$0xff]
        %v532 = vld [vmem:[%s316 + $0x10] sm:$0xff]
        %v533 = vld [vmem:[%s316 + $0x18] sm:$0xff]
        %s534 = sld [smem:[#allocation2]]
        %v535 = vstv %s534
        %v536 = vmul.f32 %v526, %v535
        %v537 = vmul.f32 %v527, %v535
        %v538 = vmul.f32 %v528, %v535
        %v539 = vmul.f32 %v529, %v535
        %v540 = vadd.f32 %v530, %v536
        %v541 = vadd.f32 %v531, %v537
        %v542 = vadd.f32 %v532, %v538
        %v543 = vadd.f32 %v533, %v539
        %544 = vst [vmem:[%s355] sm:$0xff] %v540
        %545 = vst [vmem:[%s355 + $0x8] sm:$0xff] %v541
        %546 = vst [vmem:[%s355 + $0x10] sm:$0xff] %v542
        %547 = vst [vmem:[%s355 + $0x18] sm:$0xff] %v543
        %s548 = sand.u32 %s186, 1
        %s549 = scalar_lea.sflag [#allocation5], %s548
        %s550 = sand.u32 %s186, 1
        %s551 = smul.addr %s550, 32
        %s552 = scalar_lea.vmem [#allocation9], %s551
        // Predicated region
        $region53: #{tpu_custom_call.1} parent=39 // pred_check
          %p553 = pneg %p196
        $region54: #{tpu_custom_call.1} parent=39 // pred_check_branch
          %555 = sbr.rel (%p553) target = $region56
        $region55: #{tpu_custom_call.1} parent=39 // pred_region
          %s556 = smul.u32 2, %s31
          %s557 = smul.u32 2, %s32
          %s559 = ssub.s32 512, 512
          %560 = vsyncadd %s549, %s559
          %s561 = smul.addr %s556, 2
          %s562 = sadd.s32 %s557, %s561
          %s563 = smul.addr %s562, 128
          %s564 = scalar_lea.hbm %s5, %s563
          %s565 = sshll.u32 %s552, 4
          %s566 = int_to_ptr.vmem [resolvable:$true] %s565
          %571 = dma.vmem_to_hbm [thread:$0]  %s566, 512, %s564, %s549, 256, 256, 16
        $region56: #{tpu_custom_call.1} parent=39 // pred_fallthru
          _
      $region40: #{tpu_custom_call.1} parent=5 // pred_fallthru
        _
      %p572 = scmp.le.s32.totalorder 2, %s21
      // Predicated region
      $region57: #{tpu_custom_call.1} parent=5 // pred_check
        %p573 = pneg %p572
      $region58: #{tpu_custom_call.1} parent=5 // pred_check_branch
        %575 = sbr.rel (%p573) target = $region60
      $region59: #{tpu_custom_call.1} parent=5 // pred_region
        %s576 = ssub.s32 %s21, 2
        // Predicated region
        $region61: #{tpu_custom_call.1} parent=59 // pred_check
          %p577 = pneg %p202
        $region62: #{tpu_custom_call.1} parent=59 // pred_check_branch
          %579 = sbr.rel (%p577) target = $region64
        $region63: #{tpu_custom_call.1} parent=59 // pred_region
          %s580 = sand.u32 %s187, 1
          %s581 = scalar_lea.sflag [#allocation5], %s580
          %s582 = sand.u32 %s187, 1
          %s583 = smul.addr %s582, 32
          %s584 = scalar_lea.vmem [#allocation9], %s583
          %585 = dma.done %s581, 512
        $region64: #{tpu_custom_call.1} parent=59 // pred_fallthru
          _
      $region60: #{tpu_custom_call.1} parent=5 // pred_fallthru
        _
    $region6: #{tpu_custom_call.1} parent=1 // loop_footer
      %s25 = sadd.s32 1, %s21
    $region7: #{tpu_custom_call.1} parent=1 // loop_footer_branch
      %20 = sbr.rel target = $region3
    $region8: #{tpu_custom_call.1} parent=1 // loop_exit
      _
    %586 = vsyncpa [#allocation4], 1
    %s587 = scalar_lea.sflag [#allocation4], 1
    %588 = vsyncpa %s587, 1
    %589 = vsyncpa [#allocation7], 1
    %s590 = scalar_lea.sflag [#allocation7], 1
    %591 = vsyncpa %s590, 1
    %592 = vsyncpa [#allocation5], 1
    %s593 = scalar_lea.sflag [#allocation5], 1
    %594 = vsyncpa %s593, 1

</llo_original>
